<compile_context>
chip_gen: v6e
topology: v6e:2x2x1
jax: 0.10.0
libtpu: 0.0.40
codegen_flags: <defaults>
</compile_context>

<pallas_src>
import functools

import jax
import jax.numpy as jnp
from jax.experimental import pallas as pl
from jax.experimental.pallas import tpu as pltpu


def _hloss_kernel(x_ref, o_ref, *, batch, block_rows, need_mask):
    x = x_ref[...].astype(jnp.float32)              # (TB, C); math in f32
    tb = x.shape[0]

    # Numerically stable row entropy:  sum_j p*logp = sum(e*z)/s - log(s)
    m = jnp.max(x, axis=1, keepdims=True)           # (TB, 1)
    z = x - m
    e = jnp.exp(z)                                  # one exp per element (EUP)
    s = jnp.sum(e, axis=1, keepdims=True)           # (TB, 1)
    ez = jnp.sum(e * z, axis=1, keepdims=True)      # (TB, 1)

    inv_s = pl.reciprocal(s, approx=True)           # EUP, per-row only
    inv_s = inv_s * (2.0 - s * inv_s)               # 1 Newton step -> f32 accuracy
    row_plogp = ez * inv_s - jnp.log(s)             # (TB, 1)

    if need_mask:
        # Drop rows past the true batch size (only the last tile is partial).
        row = (pl.program_id(0) * block_rows
               + jax.lax.broadcasted_iota(jnp.int32, (tb, 1), 0))
        row_plogp = jnp.where(row < batch, row_plogp, 0.0)

    # Per-tile partial sum, lane-dense unmasked store; wrapper does -sum().
    o_ref[...] = jnp.full((1, 8, 128), jnp.sum(row_plogp), dtype=jnp.float32)


def hloss(x, *, block_rows=None, vmem_limit_bytes=48 * 1024 * 1024):
    """Pallas implementation of HLoss.forward for 2-D logits (B, C).

    Softmax / log_softmax axis (PyTorch dim=1) is the last (lane) axis.
    """
    assert x.ndim == 2, "layout: (batch, num_classes), softmax over axis 1"
    B, C = x.shape
    itemsize = jnp.dtype(x.dtype).itemsize
    # Sublane packing: 8 rows per vreg group for 32-bit, 16 for 16-bit, 32 for 8-bit.
    align = 8 * max(1, 4 // itemsize)

    if block_rows is None:
        # ~8 MiB per input buffer (Pallas double-buffers it): amortizes the
        # per-step overhead and, with the 48 MiB scoped limit below, fits
        # v5e/v6e (128 MiB VMEM) and v7x (64 MiB VMEM) alike.
        budget = 8 * 1024 * 1024
        tb = budget // max(1, C * itemsize)
    else:
        tb = int(block_rows)

    if tb >= B:
        tb = B                                  # single full-batch tile
    else:
        tb = max(align, (tb // align) * align)  # sublane-pack-aligned tile rows

    num_tiles = pl.cdiv(B, tb)
    kernel = functools.partial(_hloss_kernel, batch=B, block_rows=tb,
                               need_mask=(B % tb) != 0)

    partials = pl.pallas_call(
        kernel,
        out_shape=jax.ShapeDtypeStruct((num_tiles, 8, 128), jnp.float32),
        grid_spec=pltpu.PrefetchScalarGridSpec(
            num_scalar_prefetch=0,
            grid=(num_tiles,),
            in_specs=[pl.BlockSpec((tb, C), lambda i: (i, 0))],
            out_specs=pl.BlockSpec((1, 8, 128), lambda i: (i, 0, 0)),
        ),
        compiler_params=pltpu.CompilerParams(
            dimension_semantics=("parallel",),   # shards across v7x's 2 TCs
            vmem_limit_bytes=vmem_limit_bytes,
        ),
    )(x)
    # Tiny final reduction + negation in the wrapper.
    return -jnp.sum(partials[:, 0, 0])


def _hloss_ref(x):
    # Pure-JAX reference for sanity checking.
    xf = x.astype(jnp.float32)
    logp = jax.nn.log_softmax(xf, axis=1)
    p = jax.nn.softmax(xf, axis=1)
    return -jnp.sum(p * logp)


if __name__ == "__main__":
    key = jax.random.PRNGKey(0)
    k1, k2, k3 = jax.random.split(key, 3)

    # Small PPO-style logits: batch=8, num_actions=32 (single tile).
    x1 = jax.random.normal(k1, (8, 32), dtype=jnp.float32)
    out1 = hloss(x1)
    jax.block_until_ready(out1)
    ref1 = _hloss_ref(x1)
    assert jnp.allclose(out1, ref1, atol=1e-5, rtol=1e-5), (out1, ref1)

    # Multi-tile path with a partial last tile (exercises the "parallel" grid,
    # per-tile partial outputs, and the last-tile row mask).
    x2 = jax.random.normal(k2, (40, 32), dtype=jnp.float32) * 3.0
    out2 = hloss(x2, block_rows=16)
    jax.block_until_ready(out2)
    ref2 = _hloss_ref(x2)
    assert jnp.allclose(out2, ref2, atol=1e-5, rtol=1e-5), (out2, ref2)

    # bf16 logits at the HBM boundary (halves HBM bytes); f32 math in-kernel.
    x3 = (jax.random.normal(k3, (64, 32), dtype=jnp.float32) * 2.0).astype(jnp.bfloat16)
    out3 = hloss(x3, block_rows=32)
    jax.block_until_ready(out3)
    ref3 = _hloss_ref(x3)
    assert jnp.allclose(out3, ref3, atol=1e-4, rtol=1e-4), (out3, ref3)

    print("KERNEL_OK")
</pallas_src>

<mosaic_0001>
module attributes {stable_mosaic.version = 11 : i64} {
  func.func @_hloss_kernel(%arg0: i32, %arg1: memref<8x32xf32, #tpu.memory_space<vmem>>, %arg2: memref<1x8x128xf32, #tpu.memory_space<vmem>>) attributes {dimension_semantics = [#tpu.dimension_semantics<parallel>], iteration_bounds = array<i64: 1>, scalar_prefetch = 0 : i64, scratch_operands = 0 : i64, tpu.core_type = #tpu.core_type<tc>, window_params = [{transform_indices = @transform_0, window_bounds = array<i64: 8, 32>}, {transform_indices = @transform_1, window_bounds = array<i64: 1, 8, 128>}]} {
    %c0 = arith.constant 0 : index
    %c0_0 = arith.constant 0 : index
    %0 = vector.load %arg1[%c0, %c0_0] : memref<8x32xf32, #tpu.memory_space<vmem>>, vector<8x32xf32>
    %cst = arith.constant dense<0xFF800000> : vector<8xf32>
    %1 = vector.multi_reduction <maximumf>, %0, %cst [1] : vector<8x32xf32> to vector<8xf32>
    %2 = vector.shape_cast %1 : vector<8xf32> to vector<8x1xf32>
    %3 = vector.broadcast %2 : vector<8x1xf32> to vector<8x32xf32>
    %4 = arith.subf %0, %3 : vector<8x32xf32>
    %5 = math.exp %4 : vector<8x32xf32>
    %cst_1 = arith.constant dense<0.000000e+00> : vector<8xf32>
    %6 = vector.multi_reduction <add>, %5, %cst_1 [1] : vector<8x32xf32> to vector<8xf32>
    %7 = vector.shape_cast %6 : vector<8xf32> to vector<8x1xf32>
    %8 = arith.mulf %5, %4 : vector<8x32xf32>
    %cst_2 = arith.constant dense<0.000000e+00> : vector<8xf32>
    %9 = vector.multi_reduction <add>, %8, %cst_2 [1] : vector<8x32xf32> to vector<8xf32>
    %10 = vector.shape_cast %9 : vector<8xf32> to vector<8x1xf32>
    %11 = tpu.reciprocal %7 {approx = true} : vector<8x1xf32> -> vector<8x1xf32>
    %12 = arith.mulf %7, %11 : vector<8x1xf32>
    %cst_3 = arith.constant 2.000000e+00 : f32
    %13 = vector.broadcast %cst_3 : f32 to vector<8x1xf32>
    %14 = arith.subf %13, %12 : vector<8x1xf32>
    %15 = arith.mulf %11, %14 : vector<8x1xf32>
    %16 = arith.mulf %10, %15 : vector<8x1xf32>
    %17 = math.log %7 : vector<8x1xf32>
    %18 = arith.subf %16, %17 : vector<8x1xf32>
    %19 = vector.shape_cast %18 : vector<8x1xf32> to vector<1x8x1xf32>
    %cst_4 = arith.constant dense<0.000000e+00> : vector<1xf32>
    %20 = vector.multi_reduction <add>, %19, %cst_4 [1, 2] : vector<1x8x1xf32> to vector<1xf32>
    %21 = vector.shape_cast %20 : vector<1xf32> to vector<1x1x1xf32>
    %22 = vector.extract %21[0, 0, 0] : f32 from vector<1x1x1xf32>
    %23 = vector.broadcast %22 : f32 to vector<1x8x128xf32>
    %c0_5 = arith.constant 0 : index
    %c0_6 = arith.constant 0 : index
    %c0_7 = arith.constant 0 : index
    %24 = vector.load %arg2[%c0_5, %c0_6, %c0_7] : memref<1x8x128xf32, #tpu.memory_space<vmem>>, vector<1x8x128xf32>
    tpu.vector_store %arg2[%c0_5, %c0_6, %c0_7], %23 {strides = array<i32>} : memref<1x8x128xf32, #tpu.memory_space<vmem>>, vector<1x8x128xf32>,
    return
  }
  func.func @transform_0(%arg0: i32) -> (i32, i32) {
    %c0_i32 = arith.constant 0 : i32
    %c0_i32_0 = arith.constant 0 : i32
    return %arg0, %c0_i32 : i32, i32
  }
  func.func @transform_1(%arg0: i32) -> (i32, i32, i32) {
    %c0_i32 = arith.constant 0 : i32
    %c0_i32_0 = arith.constant 0 : i32
    %c0_i32_1 = arith.constant 0 : i32
    return %arg0, %c0_i32, %c0_i32_0 : i32, i32, i32
  }
}

</mosaic_0001>

<llo_original>
// kernel: tpu_custom_call.1
$region0: #{tpu_custom_call.1}
  #allocation0 [shape = 'u32[]', space=smem, size = 0x4, offset = 0x4, fixed_abs, tag = 'smem constant byte address 0x4 - core index']
  #allocation1 [shape = 'u32[144,128]{1,0:T(1,128)}', space=vmem, size = 0x12000, scoped, tag = 'internal scratch']
  %s0 = inlined_call_operand.hbm [shape: f32[8,32], index: 0, kind: input, shape index: {}]
  %s1 = inlined_call_operand.hbm [shape: f32[1,8,128], index: 1, kind: output, shape index: {}]
  %s2 = sld [smem:[#allocation0]]
  $region18: #{tpu_custom_call.1} parent=0
    _
  %s4 = ssub.s32 1, %s2
  %s5 = scalar_select 0, %s4, %s2
  $region1: #{tpu_custom_call.1} parent=0
    #allocation2 [shape = 'u8[4096]{0}', space=vmem, size = 0x1000, scoped, tag = 'input window, operand 0, single buffered']
    #allocation3 [shape = 's32[1]{0}', space=sflag, size = 0x4, scoped, tag = 'scoped memory for tpu_custom_call.1']
    #allocation4 [shape = 's32[1]{0}', space=sflag, size = 0x4, scoped, tag = 'scoped memory for tpu_custom_call.1']
    #allocation5 [shape = 'u8[4096]{0}', space=vmem, size = 0x1000, scoped, tag = 'output window, operand 0, single buffered']
    %6 = vsyncpa [#allocation3], 0
    %7 = vsyncpa [#allocation4], 0
    // Predicated region
    $region2: #{tpu_custom_call.1} parent=1 // pred_check
      _
    $region3: #{tpu_custom_call.1} parent=1 // pred_check_branch
      %9 = sbr.rel (0) target = $region5
    $region4: #{tpu_custom_call.1} parent=1 // pred_region
      %s11 = ssub.s32 128, 128
      %12 = vsyncadd [#allocation3], %s11
      %s14 = sshll.u32 [#allocation2], 4
      %s15 = int_to_ptr.vmem [resolvable:$true] %s14
      %17 = dma.hbm_to_vmem [thread:$0]  %s0, 128, %s15, [#allocation3]
    $region5: #{tpu_custom_call.1} parent=1 // pred_fallthru
      _
    // Predicated region
    $region6: #{tpu_custom_call.1} parent=1 // pred_check
      _
    $region7: #{tpu_custom_call.1} parent=1 // pred_check_branch
      %19 = sbr.rel (0) target = $region9
    $region8: #{tpu_custom_call.1} parent=1 // pred_region
      %20 = dma.done [#allocation3], 128
    $region9: #{tpu_custom_call.1} parent=1 // pred_fallthru
      _
    %v21 = vld [vmem:[#allocation2] sm:$0xff]
    %vm22 = vcmask 261120
    %v23 = vsel %vm22, %v21, -inf
    %24 = vmax.xlane.f32.xlu0 %v23
    %v25 = vpop.xlane.xlu0 %24
    %v26 = vsub.f32 %v21, %v25
    %v27 = vmul.f32 %v26, 1.442695
    %v28 = vpow.pop %v27
    %v29 = vsel %vm22, %v28, 0.0
    %30 = vadd.xlane.f32.xlu0 %v29
    %v31 = vpop.xlane.xlu0 %30
    %v32 = vmul.f32 %v28, %v26
    %v33 = vsel %vm22, %v32, 0.0
    %34 = vadd.xlane.f32.xlu0 %v33
    %v35 = vpop.xlane.xlu0 %34
    %v36 = vrcp.pop %v31
    %v37 = vmul.f32 %v31, %v36
    %v38 = vsub.f32 2.0, %v37
    %v39 = vmul.f32 %v36, %v38
    %v40 = vmul.f32 %v35, %v39
    %v41 = vlog2.pop %v31
    %v42 = vmul.f32 %v41, 0.6931472
    %v43 = vsub.f32 %v40, %v42
    %vm44 = vcmask 7168
    %v45 = vsel %vm44, %v43, 0.0
    %46 = vadd.xlane.f32.xlu0 %v45
    %v47 = vpop.xlane.xlu0 %46
    %v48 = vrot.slane %v47, 4
    %v49 = vadd.f32 %v47, %v48
    %v50 = vrot.slane %v49, 2
    %v51 = vadd.f32 %v49, %v50
    %v52 = vrot.slane %v51, 1
    %v53 = vadd.f32 %v51, %v52
    %s54 = vtos %v53
    %v55 = vstv %s54
    %56 = vst [vmem:[#allocation5] sm:$0xff] %v55
    // Predicated region
    $region10: #{tpu_custom_call.1} parent=1 // pred_check
      _
    $region11: #{tpu_custom_call.1} parent=1 // pred_check_branch
      %58 = sbr.rel (0) target = $region13
    $region12: #{tpu_custom_call.1} parent=1 // pred_region
      %s60 = ssub.s32 128, 128
      %61 = vsyncadd [#allocation4], %s60
      %s63 = sshll.u32 [#allocation5], 4
      %s64 = int_to_ptr.vmem [resolvable:$true] %s63
      %66 = dma.vmem_to_hbm [thread:$0]  %s64, 128, %s1, [#allocation4]
    $region13: #{tpu_custom_call.1} parent=1 // pred_fallthru
      _
    // Predicated region
    $region14: #{tpu_custom_call.1} parent=1 // pred_check
      _
    $region15: #{tpu_custom_call.1} parent=1 // pred_check_branch
      %68 = sbr.rel (0) target = $region17
    $region16: #{tpu_custom_call.1} parent=1 // pred_region
      %69 = dma.done [#allocation4], 128
    $region17: #{tpu_custom_call.1} parent=1 // pred_fallthru
      _
    %70 = vsyncpa [#allocation3], 1
    %71 = vsyncpa [#allocation4], 1

</llo_original>
